<compile_context>
chip_gen: v6e
topology: v6e:2x2x1
jax: 0.10.0
libtpu: 0.0.40
codegen_flags: <defaults>
</compile_context>

<pallas_src>
import jax
import jax.numpy as jnp
from jax.experimental import pallas as pl
from jax.experimental.pallas import tpu as pltpu


def _round_up(a: int, b: int) -> int:
    return ((a + b - 1) // b) * b


def _elu(h):
    # ELU(alpha=1). The negative branch needs expm1-level accuracy near 0.
    # tanh(h/2) * (exp(h) + 1) == expm1(h) exactly, and it is numerically
    # stable near 0, while relying only on exp/tanh (both lower to the EUP).
    return jnp.where(h > 0, h, jnp.tanh(h * 0.5) * (jnp.exp(h) + 1.0))


def _bernoulli_mlp_kernel(x_ref, w1_ref, b1_ref, w2_ref, b2_ref, w3_ref, b3_ref,
                          o_ref):
    """One (TM, D) row tile through the fused MLP + sigmoid."""
    dot_dt = w1_ref.dtype  # bf16 matmul operands, f32 accumulation below.

    h = jnp.dot(x_ref[...], w1_ref[...],
                preferred_element_type=jnp.float32) + b1_ref[...]
    h = _elu(h)

    h = jnp.dot(h.astype(dot_dt), w2_ref[...],
                preferred_element_type=jnp.float32) + b2_ref[...]
    h = _elu(h)

    y = jnp.dot(h.astype(dot_dt), w3_ref[...],
                preferred_element_type=jnp.float32) + b3_ref[...]

    # sigmoid(y) = 1 / (1 + exp(-y)); exp and vrcp both issue on the EUP slot.
    p = pl.reciprocal(1.0 + jnp.exp(-y), approx=True)
    o_ref[...] = p.astype(o_ref.dtype)


def bernoulli_forward(x, params, *, row_tile=512, compute_dtype=jnp.bfloat16):
    """sigmoid(MLP(x)). x: (B, S, D) or (N, D); returns matching leading dims."""
    w1, b1, w2, b2, w3, b3 = params
    orig_shape = x.shape
    x2d = x.reshape(-1, orig_shape[-1])
    n, d = x2d.shape
    out_dim = w3.shape[1]

    # Lane-dense output: pad output features up to a multiple of 128.
    out_pad = _round_up(out_dim, 128)
    if out_pad != out_dim:
        w3 = jnp.pad(w3, ((0, 0), (0, out_pad - out_dim)))
        b3 = jnp.pad(b3, ((0, 0), (0, out_pad - out_dim)))

    # Row tile: multiple of 8 sublanes, capped so per-step VMEM stays small
    # even on v7x (64 MiB VMEM). Pad rows so the tile divides the array.
    tm = min(row_tile, _round_up(n, 8))
    n_pad = _round_up(n, tm)
    if n_pad != n:
        x2d = jnp.pad(x2d, ((0, n_pad - n), (0, 0)))

    # bf16 operands for the MXU; biases stay f32 (VPU adds in f32).
    x2d = x2d.astype(compute_dtype)
    w1, w2, w3 = (w.astype(compute_dtype) for w in (w1, w2, w3))
    b1, b2, b3 = (b.astype(jnp.float32) for b in (b1, b2, b3))

    # Weights/biases: whole array as one block, constant index_map => fetched
    # once, VMEM-resident for every grid step.
    resident = lambda a: pl.BlockSpec(a.shape, lambda i: (0,) * a.ndim)

    out2d = pl.pallas_call(
        _bernoulli_mlp_kernel,
        out_shape=jax.ShapeDtypeStruct((n_pad, out_pad), jnp.float32),
        grid=(n_pad // tm,),
        in_specs=[
            pl.BlockSpec((tm, d), lambda i: (i, 0)),
            resident(w1), resident(b1),
            resident(w2), resident(b2),
            resident(w3), resident(b3),
        ],
        out_specs=pl.BlockSpec((tm, out_pad), lambda i: (i, 0)),
        compiler_params=pltpu.CompilerParams(
            dimension_semantics=("parallel",)),
    )(x2d, w1, b1, w2, b2, w3, b3)

    out2d = out2d[:n, :out_dim]
    return out2d.reshape(*orig_shape[:-1], out_dim)


def init_params(key, input_dim, output_dim, hidden_units=(256, 256)):
    """Deterministic synthetic init (stand-in for slac's initialize_weight)."""
    # TODO(synk): slac's initialize_weight (orthogonal init) replaced by a
    # deterministic fan-in-scaled normal init; forward math is identical.
    dims = (input_dim,) + tuple(hidden_units) + (output_dim,)
    params = []
    for i in range(len(dims) - 1):
        key, kw = jax.random.split(key)
        w = (jax.random.normal(kw, (dims[i], dims[i + 1]), jnp.float32)
             / jnp.sqrt(jnp.float32(dims[i])))
        b = jnp.zeros((1, dims[i + 1]), jnp.float32)  # 2-D bias for TPU layout
        params += [w, b]
    return tuple(params)


def _reference(x, params):
    """Pure-JAX f32 reference matching the PyTorch module."""
    w1, b1, w2, b2, w3, b3 = params
    shp = x.shape
    x2 = x.reshape(-1, shp[-1])
    h = jax.nn.elu(x2 @ w1 + b1)
    h = jax.nn.elu(h @ w2 + b2)
    p = jax.nn.sigmoid(h @ w3 + b3)
    return p.reshape(*shp[:-1], p.shape[-1])


if __name__ == "__main__":
    key = jax.random.PRNGKey(0)
    B, S, input_dim, output_dim = 2, 8, 32, 16

    kx, kx2, kp = jax.random.split(key, 3)
    x3d = jax.random.normal(kx, (B, S, input_dim), jnp.float32)
    x2d = jax.random.normal(kx2, (10, input_dim), jnp.float32)  # ragged row count
    params = init_params(kp, input_dim, output_dim, hidden_units=(256, 256))

    out3d = jax.block_until_ready(bernoulli_forward(x3d, params))
    out2d = jax.block_until_ready(bernoulli_forward(x2d, params))

    ref3d = _reference(x3d, params)
    ref2d = _reference(x2d, params)

    assert out3d.shape == (B, S, output_dim), out3d.shape
    assert out2d.shape == (10, output_dim), out2d.shape
    # bf16 matmul operands + approx-reciprocal sigmoid => modest tolerance vs
    # the pure-f32 reference.
    assert jnp.allclose(out3d, ref3d, atol=2e-2, rtol=2e-2), "3-D mismatch"
    assert jnp.allclose(out2d, ref2d, atol=2e-2, rtol=2e-2), "2-D mismatch"
    assert bool(jnp.all((out3d >= 0.0) & (out3d <= 1.0)))
    assert bool(jnp.all((out2d >= 0.0) & (out2d <= 1.0)))

    print("KERNEL_OK")
</pallas_src>

<mosaic_0001>
module attributes {stable_mosaic.version = 11 : i64} {
  func.func @_bernoulli_mlp_kernel(%arg0: i32, %arg1: memref<16x32xbf16, #tpu.memory_space<vmem>>, %arg2: memref<32x256xbf16, #tpu.memory_space<vmem>>, %arg3: memref<1x256xf32, #tpu.memory_space<vmem>>, %arg4: memref<256x256xbf16, #tpu.memory_space<vmem>>, %arg5: memref<1x256xf32, #tpu.memory_space<vmem>>, %arg6: memref<256x128xbf16, #tpu.memory_space<vmem>>, %arg7: memref<1x128xf32, #tpu.memory_space<vmem>>, %arg8: memref<16x128xf32, #tpu.memory_space<vmem>>) attributes {dimension_semantics = [#tpu.dimension_semantics<parallel>], iteration_bounds = array<i64: 1>, scalar_prefetch = 0 : i64, scratch_operands = 0 : i64, tpu.core_type = #tpu.core_type<tc>, window_params = [{transform_indices = @transform_0, window_bounds = array<i64: 16, 32>}, {pipeline_mode = #tpu.pipeline_mode<synchronous>, transform_indices = @transform_1, window_bounds = array<i64: 32, 256>}, {pipeline_mode = #tpu.pipeline_mode<synchronous>, transform_indices = @transform_2, window_bounds = array<i64: 1, 256>}, {pipeline_mode = #tpu.pipeline_mode<synchronous>, transform_indices = @transform_3, window_bounds = array<i64: 256, 256>}, {pipeline_mode = #tpu.pipeline_mode<synchronous>, transform_indices = @transform_4, window_bounds = array<i64: 1, 256>}, {pipeline_mode = #tpu.pipeline_mode<synchronous>, transform_indices = @transform_5, window_bounds = array<i64: 256, 128>}, {pipeline_mode = #tpu.pipeline_mode<synchronous>, transform_indices = @transform_6, window_bounds = array<i64: 1, 128>}, {transform_indices = @transform_7, window_bounds = array<i64: 16, 128>}]} {
    %c0 = arith.constant 0 : index
    %c0_0 = arith.constant 0 : index
    %0 = vector.load %arg1[%c0, %c0_0] : memref<16x32xbf16, #tpu.memory_space<vmem>>, vector<16x32xbf16>
    %c0_1 = arith.constant 0 : index
    %c0_2 = arith.constant 0 : index
    %1 = vector.load %arg2[%c0_1, %c0_2] : memref<32x256xbf16, #tpu.memory_space<vmem>>, vector<32x256xbf16>
    %cst = arith.constant dense<0.000000e+00> : vector<16x256xf32>
    %2 = tpu.matmul %0, %1, %cst {dimension_numbers = #tpu.dot_dimension_numbers<[1], [0], [0], [1], [0, 0, 1, 1], [], []>} : vector<16x32xbf16>, vector<32x256xbf16>, vector<16x256xf32> -> vector<16x256xf32>
    %c0_3 = arith.constant 0 : index
    %c0_4 = arith.constant 0 : index
    %3 = vector.load %arg3[%c0_3, %c0_4] : memref<1x256xf32, #tpu.memory_space<vmem>>, vector<1x256xf32>
    %4 = vector.broadcast %3 : vector<1x256xf32> to vector<16x256xf32>
    %5 = arith.addf %2, %4 : vector<16x256xf32>
    %cst_5 = arith.constant 0.000000e+00 : f32
    %6 = vector.broadcast %cst_5 : f32 to vector<16x256xf32>
    %7 = arith.cmpf ogt, %5, %6 : vector<16x256xf32>
    %cst_6 = arith.constant 5.000000e-01 : f32
    %8 = vector.broadcast %cst_6 : f32 to vector<16x256xf32>
    %9 = arith.mulf %5, %8 : vector<16x256xf32>
    %10 = math.tanh %9 : vector<16x256xf32>
    %11 = math.exp %5 : vector<16x256xf32>
    %cst_7 = arith.constant 1.000000e+00 : f32
    %12 = vector.broadcast %cst_7 : f32 to vector<16x256xf32>
    %13 = arith.addf %11, %12 : vector<16x256xf32>
    %14 = arith.mulf %10, %13 : vector<16x256xf32>
    %15 = arith.select %7, %5, %14 : vector<16x256xi1>, vector<16x256xf32>
    %16 = arith.truncf %15 : vector<16x256xf32> to vector<16x256xbf16>
    %c0_8 = arith.constant 0 : index
    %c0_9 = arith.constant 0 : index
    %17 = vector.load %arg4[%c0_8, %c0_9] : memref<256x256xbf16, #tpu.memory_space<vmem>>, vector<256x256xbf16>
    %cst_10 = arith.constant dense<0.000000e+00> : vector<16x256xf32>
    %18 = tpu.matmul %16, %17, %cst_10 {dimension_numbers = #tpu.dot_dimension_numbers<[1], [0], [0], [1], [0, 0, 1, 1], [], []>} : vector<16x256xbf16>, vector<256x256xbf16>, vector<16x256xf32> -> vector<16x256xf32>
    %c0_11 = arith.constant 0 : index
    %c0_12 = arith.constant 0 : index
    %19 = vector.load %arg5[%c0_11, %c0_12] : memref<1x256xf32, #tpu.memory_space<vmem>>, vector<1x256xf32>
    %20 = vector.broadcast %19 : vector<1x256xf32> to vector<16x256xf32>
    %21 = arith.addf %18, %20 : vector<16x256xf32>
    %cst_13 = arith.constant 0.000000e+00 : f32
    %22 = vector.broadcast %cst_13 : f32 to vector<16x256xf32>
    %23 = arith.cmpf ogt, %21, %22 : vector<16x256xf32>
    %cst_14 = arith.constant 5.000000e-01 : f32
    %24 = vector.broadcast %cst_14 : f32 to vector<16x256xf32>
    %25 = arith.mulf %21, %24 : vector<16x256xf32>
    %26 = math.tanh %25 : vector<16x256xf32>
    %27 = math.exp %21 : vector<16x256xf32>
    %cst_15 = arith.constant 1.000000e+00 : f32
    %28 = vector.broadcast %cst_15 : f32 to vector<16x256xf32>
    %29 = arith.addf %27, %28 : vector<16x256xf32>
    %30 = arith.mulf %26, %29 : vector<16x256xf32>
    %31 = arith.select %23, %21, %30 : vector<16x256xi1>, vector<16x256xf32>
    %32 = arith.truncf %31 : vector<16x256xf32> to vector<16x256xbf16>
    %c0_16 = arith.constant 0 : index
    %c0_17 = arith.constant 0 : index
    %33 = vector.load %arg6[%c0_16, %c0_17] : memref<256x128xbf16, #tpu.memory_space<vmem>>, vector<256x128xbf16>
    %cst_18 = arith.constant dense<0.000000e+00> : vector<16x128xf32>
    %34 = tpu.matmul %32, %33, %cst_18 {dimension_numbers = #tpu.dot_dimension_numbers<[1], [0], [0], [1], [0, 0, 1, 1], [], []>} : vector<16x256xbf16>, vector<256x128xbf16>, vector<16x128xf32> -> vector<16x128xf32>
    %c0_19 = arith.constant 0 : index
    %c0_20 = arith.constant 0 : index
    %35 = vector.load %arg7[%c0_19, %c0_20] : memref<1x128xf32, #tpu.memory_space<vmem>>, vector<1x128xf32>
    %36 = vector.broadcast %35 : vector<1x128xf32> to vector<16x128xf32>
    %37 = arith.addf %34, %36 : vector<16x128xf32>
    %cst_21 = arith.constant 0.000000e+00 : f32
    %38 = vector.broadcast %cst_21 : f32 to vector<16x128xf32>
    %39 = arith.subf %38, %37 : vector<16x128xf32>
    %40 = math.exp %39 : vector<16x128xf32>
    %cst_22 = arith.constant 1.000000e+00 : f32
    %41 = vector.broadcast %cst_22 : f32 to vector<16x128xf32>
    %42 = arith.addf %41, %40 : vector<16x128xf32>
    %43 = tpu.reciprocal %42 {approx = true} : vector<16x128xf32> -> vector<16x128xf32>
    %c0_23 = arith.constant 0 : index
    %c0_24 = arith.constant 0 : index
    %44 = vector.load %arg8[%c0_23, %c0_24] : memref<16x128xf32, #tpu.memory_space<vmem>>, vector<16x128xf32>
    tpu.vector_store %arg8[%c0_23, %c0_24], %43 {strides = array<i32>} : memref<16x128xf32, #tpu.memory_space<vmem>>, vector<16x128xf32>,
    return
  }
  func.func @transform_0(%arg0: i32) -> (i32, i32) {
    %c0_i32 = arith.constant 0 : i32
    %c0_i32_0 = arith.constant 0 : i32
    return %arg0, %c0_i32 : i32, i32
  }
  func.func @transform_1(%arg0: i32) -> (i32, i32) {
    %c0_i32 = arith.constant 0 : i32
    %c0_i32_0 = arith.constant 0 : i32
    %c0_i32_1 = arith.constant 0 : i32
    return %c0_i32, %c0_i32_0 : i32, i32
  }
  func.func @transform_2(%arg0: i32) -> (i32, i32) {
    %c0_i32 = arith.constant 0 : i32
    %c0_i32_0 = arith.constant 0 : i32
    %c0_i32_1 = arith.constant 0 : i32
    return %c0_i32, %c0_i32_0 : i32, i32
  }
  func.func @transform_3(%arg0: i32) -> (i32, i32) {
    %c0_i32 = arith.constant 0 : i32
    %c0_i32_0 = arith.constant 0 : i32
    %c0_i32_1 = arith.constant 0 : i32
    return %c0_i32, %c0_i32_0 : i32, i32
  }
  func.func @transform_4(%arg0: i32) -> (i32, i32) {
    %c0_i32 = arith.constant 0 : i32
    %c0_i32_0 = arith.constant 0 : i32
    %c0_i32_1 = arith.constant 0 : i32
    return %c0_i32, %c0_i32_0 : i32, i32
  }
  func.func @transform_5(%arg0: i32) -> (i32, i32) {
    %c0_i32 = arith.constant 0 : i32
    %c0_i32_0 = arith.constant 0 : i32
    %c0_i32_1 = arith.constant 0 : i32
    return %c0_i32, %c0_i32_0 : i32, i32
  }
  func.func @transform_6(%arg0: i32) -> (i32, i32) {
    %c0_i32 = arith.constant 0 : i32
    %c0_i32_0 = arith.constant 0 : i32
    %c0_i32_1 = arith.constant 0 : i32
    return %c0_i32, %c0_i32_0 : i32, i32
  }
  func.func @transform_7(%arg0: i32) -> (i32, i32) {
    %c0_i32 = arith.constant 0 : i32
    %c0_i32_0 = arith.constant 0 : i32
    return %arg0, %c0_i32 : i32, i32
  }
}

</mosaic_0001>

<llo_original>
// kernel: tpu_custom_call.1
$region0: #{tpu_custom_call.1}
  #allocation0 [shape = 'u32[]', space=smem, size = 0x4, offset = 0x4, fixed_abs, tag = 'smem constant byte address 0x4 - core index']
  #allocation1 [shape = 'u32[144,128]{1,0:T(1,128)}', space=vmem, size = 0x12000, scoped, tag = 'internal scratch']
  %s0 = inlined_call_operand.hbm [shape: bf16[16,32], index: 0, kind: input, shape index: {}]
  %s1 = inlined_call_operand.hbm [shape: bf16[32,256], index: 1, kind: input, shape index: {}]
  %s2 = inlined_call_operand.vmem [shape: f32[1,256], index: 2, kind: input, shape index: {}]
  %s3 = inlined_call_operand.hbm [shape: bf16[256,256], index: 3, kind: input, shape index: {}]
  %s4 = inlined_call_operand.vmem [shape: f32[1,256], index: 4, kind: input, shape index: {}]
  %s5 = inlined_call_operand.hbm [shape: bf16[256,128], index: 5, kind: input, shape index: {}]
  %s6 = inlined_call_operand.vmem [shape: f32[1,128], index: 6, kind: input, shape index: {}]
  %s7 = inlined_call_operand.hbm [shape: f32[16,128], index: 7, kind: output, shape index: {}]
  %s8 = sld [smem:[#allocation0]]
  $region54: #{tpu_custom_call.1} parent=0
    _
  %s10 = ssub.s32 1, %s8
  %s11 = scalar_select 0, %s10, %s8
  $region1: #{tpu_custom_call.1} parent=0
    #allocation2 [shape = 'u8[4096]{0}', space=vmem, size = 0x1000, scoped, tag = 'input window, operand 0, single buffered']
    #allocation3 [shape = 's32[1]{0}', space=sflag, size = 0x4, scoped, tag = 'scoped memory for tpu_custom_call.1']
    #allocation4 [shape = 's32[1]{0}', space=sflag, size = 0x4, scoped, tag = 'scoped memory for tpu_custom_call.1']
    #allocation5 [shape = 'u8[16384]{0}', space=vmem, size = 0x4000, scoped, tag = 'input window, operand 1, single buffered']
    #allocation6 [shape = 's32[1]{0}', space=sflag, size = 0x4, scoped, tag = 'scoped memory for tpu_custom_call.1']
    #allocation7 [shape = 'u8[131072]{0}', space=vmem, size = 0x20000, scoped, tag = 'input window, operand 3, single buffered']
    #allocation8 [shape = 'u8[65536]{0}', space=vmem, size = 0x10000, scoped, tag = 'input window, operand 5, single buffered']
    #allocation9 [shape = 's32[1]{0}', space=sflag, size = 0x4, scoped, tag = 'scoped memory for tpu_custom_call.1']
    #allocation10 [shape = 'u8[8192]{0}', space=vmem, size = 0x2000, scoped, tag = 'output window, operand 0, single buffered']
    %12 = vsyncpa [#allocation3], 0
    %13 = vsyncpa [#allocation6], 0
    %14 = vsyncpa [#allocation9], 0
    %15 = vsyncpa [#allocation4], 0
    // Predicated region
    $region2: #{tpu_custom_call.1} parent=1 // pred_check
      _
    $region3: #{tpu_custom_call.1} parent=1 // pred_check_branch
      %17 = sbr.rel (0) target = $region5
    $region4: #{tpu_custom_call.1} parent=1 // pred_region
      %s19 = ssub.s32 128, 128
      %20 = vsyncadd [#allocation3], %s19
      %s21 = sshll.u32 [#allocation2], 4
      %s22 = int_to_ptr.vmem [resolvable:$true] %s21
      %27 = dma.hbm_to_vmem [thread:$0]  %s0, 128, %s22, [#allocation3], 64, 64, 4
    $region5: #{tpu_custom_call.1} parent=1 // pred_fallthru
      _
    // Predicated region
    $region6: #{tpu_custom_call.1} parent=1 // pred_check
      _
    $region7: #{tpu_custom_call.1} parent=1 // pred_check_branch
      %29 = sbr.rel (0) target = $region9
    $region8: #{tpu_custom_call.1} parent=1 // pred_region
      %s31 = ssub.s32 512, 512
      %32 = vsyncadd [#allocation6], %s31
      %s33 = sshll.u32 [#allocation5], 4
      %s34 = int_to_ptr.vmem [resolvable:$true] %s33
      %39 = dma.hbm_to_vmem [thread:$0]  %s1, 512, %s34, [#allocation6], 128, 128, 8
    $region9: #{tpu_custom_call.1} parent=1 // pred_fallthru
      _
    // Predicated region
    $region10: #{tpu_custom_call.1} parent=1 // pred_check
      _
    $region11: #{tpu_custom_call.1} parent=1 // pred_check_branch
      %41 = sbr.rel (0) target = $region13
    $region12: #{tpu_custom_call.1} parent=1 // pred_region
      _
    $region13: #{tpu_custom_call.1} parent=1 // pred_fallthru
      _
    // Predicated region
    $region14: #{tpu_custom_call.1} parent=1 // pred_check
      _
    $region15: #{tpu_custom_call.1} parent=1 // pred_check_branch
      %43 = sbr.rel (0) target = $region17
    $region16: #{tpu_custom_call.1} parent=1 // pred_region
      %s45 = ssub.s32 4096, 4096
      %46 = vsyncadd [#allocation6], %s45
      %s47 = sshll.u32 [#allocation7], 4
      %s48 = int_to_ptr.vmem [resolvable:$true] %s47
      %53 = dma.hbm_to_vmem [thread:$0]  %s3, 4096, %s48, [#allocation6], 128, 128, 8
    $region17: #{tpu_custom_call.1} parent=1 // pred_fallthru
      _
    // Predicated region
    $region18: #{tpu_custom_call.1} parent=1 // pred_check
      _
    $region19: #{tpu_custom_call.1} parent=1 // pred_check_branch
      %55 = sbr.rel (0) target = $region21
    $region20: #{tpu_custom_call.1} parent=1 // pred_region
      _
    $region21: #{tpu_custom_call.1} parent=1 // pred_fallthru
      _
    // Predicated region
    $region22: #{tpu_custom_call.1} parent=1 // pred_check
      _
    $region23: #{tpu_custom_call.1} parent=1 // pred_check_branch
      %57 = sbr.rel (0) target = $region25
    $region24: #{tpu_custom_call.1} parent=1 // pred_region
      %s59 = ssub.s32 2048, 2048
      %60 = vsyncadd [#allocation9], %s59
      %s61 = sshll.u32 [#allocation8], 4
      %s62 = int_to_ptr.vmem [resolvable:$true] %s61
      %67 = dma.hbm_to_vmem [thread:$0]  %s5, 2048, %s62, [#allocation9], 64, 64, 4
    $region25: #{tpu_custom_call.1} parent=1 // pred_fallthru
      _
    // Predicated region
    $region26: #{tpu_custom_call.1} parent=1 // pred_check
      _
    $region27: #{tpu_custom_call.1} parent=1 // pred_check_branch
      %69 = sbr.rel (0) target = $region29
    $region28: #{tpu_custom_call.1} parent=1 // pred_region
      _
    $region29: #{tpu_custom_call.1} parent=1 // pred_fallthru
      _
    // Predicated region
    $region30: #{tpu_custom_call.1} parent=1 // pred_check
      _
    $region31: #{tpu_custom_call.1} parent=1 // pred_check_branch
      %71 = sbr.rel (0) target = $region33
    $region32: #{tpu_custom_call.1} parent=1 // pred_region
      %72 = dma.done [#allocation3], 128
    $region33: #{tpu_custom_call.1} parent=1 // pred_fallthru
      _
    // Predicated region
    $region34: #{tpu_custom_call.1} parent=1 // pred_check
      _
    $region35: #{tpu_custom_call.1} parent=1 // pred_check_branch
      %74 = sbr.rel (0) target = $region37
    $region36: #{tpu_custom_call.1} parent=1 // pred_region
      %75 = dma.done [#allocation6], 512
    $region37: #{tpu_custom_call.1} parent=1 // pred_fallthru
      _
    // Predicated region
    $region38: #{tpu_custom_call.1} parent=1 // pred_check
      _
    $region39: #{tpu_custom_call.1} parent=1 // pred_check_branch
      %77 = sbr.rel (0) target = $region41
    $region40: #{tpu_custom_call.1} parent=1 // pred_region
      %78 = dma.done [#allocation6], 4096
    $region41: #{tpu_custom_call.1} parent=1 // pred_fallthru
      _
    // Predicated region
    $region42: #{tpu_custom_call.1} parent=1 // pred_check
      _
    $region43: #{tpu_custom_call.1} parent=1 // pred_check_branch
      %80 = sbr.rel (0) target = $region45
    $region44: #{tpu_custom_call.1} parent=1 // pred_region
      %81 = dma.done [#allocation9], 2048
    $region45: #{tpu_custom_call.1} parent=1 // pred_fallthru
      _
    %v83 = vld [vmem:[#allocation2] sm:$0xf]
    %v84 = vld [vmem:[#allocation2 + $0x4] sm:$0xf]
    %v85 = vld [vmem:[#allocation5] sm:$0xff]
    %v86 = vld [vmem:[#allocation5 + $0x8] sm:$0xff]
    %v87 = vld [vmem:[#allocation5 + $0x10] sm:$0xff]
    %v88 = vld [vmem:[#allocation5 + $0x18] sm:$0xff]
    %v89 = vld [vmem:[%s2] sm:$0x3]
    %v91 = vlaneseq
    %v92 = vshrl.u32 %v91, 7
    %v93 = vsub.s32 0, %v92
    %v94 = vrot.slane %v89, %v93
    %v95 = vlaneseq
    %v96 = vshrl.u32 %v95, 7
    %v97 = vsub.s32 1, %v96
    %v98 = vrot.slane %v89, %v97
    %v103 = vunpack.c.l.b16 %v83
    %v104 = vunpack.c.l.b16 %v84
    %v105 = vpack.c.b16 %v104, %v103
    %v110 = vunpack.c.l.b16 %v85
    %v111 = vunpack.c.h.b16 %v85
    %v112 = vunpack.c.l.b16 %v86
    %v113 = vunpack.c.h.b16 %v86
    %v114 = vunpack.c.l.b16 %v87
    %v115 = vunpack.c.h.b16 %v87
    %v116 = vunpack.c.l.b16 %v88
    %v117 = vunpack.c.h.b16 %v88
    %v118 = vpack.c.b16 %v112, %v110
    %v119 = vpack.c.b16 %v113, %v111
    %v120 = vpack.c.b16 %v116, %v114
    %v121 = vpack.c.b16 %v117, %v115
    %vm126 = vcmask 261120
    %v128 = vsel %vm126, %v105, 0
    %130 = vmatprep.subr.bf16.mxu0 0
    %131 = vmatpush1.bf16.msra.mxu0 0
    %132 = vmatprep.subr.bf16.mxu0 0
    %133 = vmatpush1.bf16.msra.mxu0 0
    %134 = vmatprep.subr.bf16.mxu0 0
    %135 = vmatpush1.bf16.msra.mxu0 0
    %136 = vmatprep.subr.bf16.mxu0 0
    %137 = vmatpush1.bf16.msra.mxu0 0
    %138 = vmatprep.subr.bf16.mxu0 0
    %139 = vmatpush1.bf16.msra.mxu0 0
    %140 = vmatprep.subr.bf16.mxu0 0
    %141 = vmatpush1.bf16.msra.mxu0 0
    %142 = vmatprep.subr.bf16.mxu0 %v121
    %143 = vmatpush1.bf16.msra.mxu0 %v120
    %144 = vmatprep.subr.bf16.mxu0 %v119
    %145 = vmatpush1.bf16.msra.mxu0 %v118
    %146 = vmatprep.subr.bf16.mxu0 0
    %147 = vmatpush2.bf16.msra.mxu0 0
    %148 = vmatprep.subr.bf16.mxu0 0
    %149 = vmatpush2.bf16.msra.mxu0 0
    %150 = vmatprep.subr.bf16.mxu0 0
    %151 = vmatpush2.bf16.msra.mxu0 0
    %152 = vmatprep.subr.bf16.mxu0 0
    %153 = vmatpush2.bf16.msra.mxu0 0
    %154 = vmatprep.subr.bf16.mxu0 0
    %155 = vmatpush2.bf16.msra.mxu0 0
    %156 = vmatprep.subr.bf16.mxu0 0
    %157 = vmatpush2.bf16.msra.mxu0 0
    %158 = vmatprep.subr.bf16.mxu0 0
    %159 = vmatpush2.bf16.msra.mxu0 0
    %160 = vmatprep.subr.bf16.mxu0 0
    %161 = vmatpush2.bf16.msra.mxu0 0
    %162 = vmatprep.mubr.bf16.mxu0 0
    %163 = vmatmul.mubr.bf16.gmra.mxu0 %v128
    %v164 = vpop.f32.mrf.mxu0
    %v165 = vadd.f32 %v94, %v164
    %v166 = vpop.f32.mrf.mxu0
    %v167 = vadd.f32 %v98, %v166
    %v168 = vpop.f32.mrf.mxu0
    %v169 = vadd.f32 %v94, %v168
    %v170 = vpop.f32.mrf.mxu0
    %v171 = vadd.f32 %v98, %v170
    %172 = vdwg.mxu0
    %vm173 = vcmp.gt.f32.partialorder %v165, 0.0
    %vm174 = vcmp.gt.f32.partialorder %v167, 0.0
    %vm175 = vcmp.gt.f32.partialorder %v169, 0.0
    %vm176 = vcmp.gt.f32.partialorder %v171, 0.0
    %v177 = vmul.f32 %v165, 0.5
    %v178 = vmul.f32 %v167, 0.5
    %v179 = vmul.f32 %v169, 0.5
    %v180 = vmul.f32 %v171, 0.5
    %v181 = vtanh.pop %v177
    %v182 = vtanh.pop %v178
    %v183 = vtanh.pop %v179
    %v184 = vtanh.pop %v180
    %v185 = vmul.f32 %v165, 1.442695
    %v186 = vpow.pop %v185
    %v187 = vmul.f32 %v167, 1.442695
    %v188 = vpow.pop %v187
    %v189 = vmul.f32 %v169, 1.442695
    %v190 = vpow.pop %v189
    %v191 = vmul.f32 %v171, 1.442695
    %v192 = vpow.pop %v191
    %v193 = vadd.f32 %v186, 1.0
    %v194 = vadd.f32 %v188, 1.0
    %v195 = vadd.f32 %v190, 1.0
    %v196 = vadd.f32 %v192, 1.0
    %v197 = vmul.f32 %v181, %v193
    %v198 = vmul.f32 %v182, %v194
    %v199 = vmul.f32 %v183, %v195
    %v200 = vmul.f32 %v184, %v196
    %v201 = vsel %vm173, %v165, %v197
    %v202 = vsel %vm174, %v167, %v198
    %v203 = vsel %vm175, %v169, %v199
    %v204 = vsel %vm176, %v171, %v200
    %v205 = vpack.c.bf16 %v203, %v201
    %v206 = vpack.c.bf16 %v204, %v202
    %v207 = vld [vmem:[#allocation7] sm:$0xff]
    %v208 = vld [vmem:[#allocation7 + $0x8] sm:$0xff]
    %v209 = vld [vmem:[#allocation7 + $0x10] sm:$0xff]
    %v210 = vld [vmem:[#allocation7 + $0x18] sm:$0xff]
    %v211 = vld [vmem:[#allocation7 + $0x20] sm:$0xff]
    %v212 = vld [vmem:[#allocation7 + $0x28] sm:$0xff]
    %v213 = vld [vmem:[#allocation7 + $0x30] sm:$0xff]
    %v214 = vld [vmem:[#allocation7 + $0x38] sm:$0xff]
    %v215 = vld [vmem:[#allocation7 + $0x40] sm:$0xff]
    %v216 = vld [vmem:[#allocation7 + $0x48] sm:$0xff]
    %v217 = vld [vmem:[#allocation7 + $0x50] sm:$0xff]
    %v218 = vld [vmem:[#allocation7 + $0x58] sm:$0xff]
    %v219 = vld [vmem:[#allocation7 + $0x60] sm:$0xff]
    %v220 = vld [vmem:[#allocation7 + $0x68] sm:$0xff]
    %v221 = vld [vmem:[#allocation7 + $0x70] sm:$0xff]
    %v222 = vld [vmem:[#allocation7 + $0x78] sm:$0xff]
    %v223 = vld [vmem:[#allocation7 + $0x80] sm:$0xff]
    %v224 = vld [vmem:[#allocation7 + $0x88] sm:$0xff]
    %v225 = vld [vmem:[#allocation7 + $0x90] sm:$0xff]
    %v226 = vld [vmem:[#allocation7 + $0x98] sm:$0xff]
    %v227 = vld [vmem:[#allocation7 + $0xa0] sm:$0xff]
    %v228 = vld [vmem:[#allocation7 + $0xa8] sm:$0xff]
    %v229 = vld [vmem:[#allocation7 + $0xb0] sm:$0xff]
    %v230 = vld [vmem:[#allocation7 + $0xb8] sm:$0xff]
    %v231 = vld [vmem:[#allocation7 + $0xc0] sm:$0xff]
    %v232 = vld [vmem:[#allocation7 + $0xc8] sm:$0xff]
    %v233 = vld [vmem:[#allocation7 + $0xd0] sm:$0xff]
    %v234 = vld [vmem:[#allocation7 + $0xd8] sm:$0xff]
    %v235 = vld [vmem:[#allocation7 + $0xe0] sm:$0xff]
    %v236 = vld [vmem:[#allocation7 + $0xe8] sm:$0xff]
    %v237 = vld [vmem:[#allocation7 + $0xf0] sm:$0xff]
    %v238 = vld [vmem:[#allocation7 + $0xf8] sm:$0xff]
    %v239 = vld [vmem:[%s4] sm:$0x3]
    %v241 = vlaneseq
    %v242 = vshrl.u32 %v241, 7
    %v243 = vsub.s32 0, %v242
    %v244 = vrot.slane %v239, %v243
    %v245 = vlaneseq
    %v246 = vshrl.u32 %v245, 7
    %v247 = vsub.s32 1, %v246
    %v248 = vrot.slane %v239, %v247
    %v283 = vunpack.c.l.b16 %v207
    %v284 = vunpack.c.h.b16 %v207
    %v285 = vunpack.c.l.b16 %v208
    %v286 = vunpack.c.h.b16 %v208
    %v287 = vunpack.c.l.b16 %v209
    %v288 = vunpack.c.h.b16 %v209
    %v289 = vunpack.c.l.b16 %v210
    %v290 = vunpack.c.h.b16 %v210
    %v291 = vunpack.c.l.b16 %v211
    %v292 = vunpack.c.h.b16 %v211
    %v293 = vunpack.c.l.b16 %v212
    %v294 = vunpack.c.h.b16 %v212
    %v295 = vunpack.c.l.b16 %v213
    %v296 = vunpack.c.h.b16 %v213
    %v297 = vunpack.c.l.b16 %v214
    %v298 = vunpack.c.h.b16 %v214
    %v299 = vunpack.c.l.b16 %v215
    %v300 = vunpack.c.h.b16 %v215
    %v301 = vunpack.c.l.b16 %v216
    %v302 = vunpack.c.h.b16 %v216
    %v303 = vunpack.c.l.b16 %v217
    %v304 = vunpack.c.h.b16 %v217
    %v305 = vunpack.c.l.b16 %v218
    %v306 = vunpack.c.h.b16 %v218
    %v307 = vunpack.c.l.b16 %v219
    %v308 = vunpack.c.h.b16 %v219
    %v309 = vunpack.c.l.b16 %v220
    %v310 = vunpack.c.h.b16 %v220
    %v311 = vunpack.c.l.b16 %v221
    %v312 = vunpack.c.h.b16 %v221
    %v313 = vunpack.c.l.b16 %v222
    %v314 = vunpack.c.h.b16 %v222
    %v315 = vunpack.c.l.b16 %v223
    %v316 = vunpack.c.h.b16 %v223
    %v317 = vunpack.c.l.b16 %v224
    %v318 = vunpack.c.h.b16 %v224
    %v319 = vunpack.c.l.b16 %v225
    %v320 = vunpack.c.h.b16 %v225
    %v321 = vunpack.c.l.b16 %v226
    %v322 = vunpack.c.h.b16 %v226
    %v323 = vunpack.c.l.b16 %v227
    %v324 = vunpack.c.h.b16 %v227
    %v325 = vunpack.c.l.b16 %v228
    %v326 = vunpack.c.h.b16 %v228
    %v327 = vunpack.c.l.b16 %v229
    %v328 = vunpack.c.h.b16 %v229
    %v329 = vunpack.c.l.b16 %v230
    %v330 = vunpack.c.h.b16 %v230
    %v331 = vunpack.c.l.b16 %v231
    %v332 = vunpack.c.h.b16 %v231
    %v333 = vunpack.c.l.b16 %v232
    %v334 = vunpack.c.h.b16 %v232
    %v335 = vunpack.c.l.b16 %v233
    %v336 = vunpack.c.h.b16 %v233
    %v337 = vunpack.c.l.b16 %v234
    %v338 = vunpack.c.h.b16 %v234
    %v339 = vunpack.c.l.b16 %v235
    %v340 = vunpack.c.h.b16 %v235
    %v341 = vunpack.c.l.b16 %v236
    %v342 = vunpack.c.h.b16 %v236
    %v343 = vunpack.c.l.b16 %v237
    %v344 = vunpack.c.h.b16 %v237
    %v345 = vunpack.c.l.b16 %v238
    %v346 = vunpack.c.h.b16 %v238
    %v347 = vpack.c.b16 %v285, %v283
    %v348 = vpack.c.b16 %v286, %v284
    %v349 = vpack.c.b16 %v289, %v287
    %v350 = vpack.c.b16 %v290, %v288
    %v351 = vpack.c.b16 %v293, %v291
    %v352 = vpack.c.b16 %v294, %v292
    %v353 = vpack.c.b16 %v297, %v295
    %v354 = vpack.c.b16 %v298, %v296
    %v355 = vpack.c.b16 %v301, %v299
    %v356 = vpack.c.b16 %v302, %v300
    %v357 = vpack.c.b16 %v305, %v303
    %v358 = vpack.c.b16 %v306, %v304
    %v359 = vpack.c.b16 %v309, %v307
    %v360 = vpack.c.b16 %v310, %v308
    %v361 = vpack.c.b16 %v313, %v311
    %v362 = vpack.c.b16 %v314, %v312
    %v363 = vpack.c.b16 %v317, %v315
    %v364 = vpack.c.b16 %v318, %v316
    %v365 = vpack.c.b16 %v321, %v319
    %v366 = vpack.c.b16 %v322, %v320
    %v367 = vpack.c.b16 %v325, %v323
    %v368 = vpack.c.b16 %v326, %v324
    %v369 = vpack.c.b16 %v329, %v327
    %v370 = vpack.c.b16 %v330, %v328
    %v371 = vpack.c.b16 %v333, %v331
    %v372 = vpack.c.b16 %v334, %v332
    %v373 = vpack.c.b16 %v337, %v335
    %v374 = vpack.c.b16 %v338, %v336
    %v375 = vpack.c.b16 %v341, %v339
    %v376 = vpack.c.b16 %v342, %v340
    %v377 = vpack.c.b16 %v345, %v343
    %v378 = vpack.c.b16 %v346, %v344
    %411 = vmatprep.subr.bf16.mxu0 %v362
    %412 = vmatpush1.bf16.msra.mxu0 %v361
    %413 = vmatprep.subr.bf16.mxu0 %v360
    %414 = vmatpush1.bf16.msra.mxu0 %v359
    %415 = vmatprep.subr.bf16.mxu0 %v358
    %416 = vmatpush1.bf16.msra.mxu0 %v357
    %417 = vmatprep.subr.bf16.mxu0 %v356
    %418 = vmatpush1.bf16.msra.mxu0 %v355
    %419 = vmatprep.subr.bf16.mxu0 %v354
    %420 = vmatpush1.bf16.msra.mxu0 %v353
    %421 = vmatprep.subr.bf16.mxu0 %v352
    %422 = vmatpush1.bf16.msra.mxu0 %v351
    %423 = vmatprep.subr.bf16.mxu0 %v350
    %424 = vmatpush1.bf16.msra.mxu0 %v349
    %425 = vmatprep.subr.bf16.mxu0 %v348
    %426 = vmatpush1.bf16.msra.mxu0 %v347
    %427 = vmatprep.subr.bf16.mxu0 %v378
    %428 = vmatpush2.bf16.msra.mxu0 %v377
    %429 = vmatprep.subr.bf16.mxu0 %v376
    %430 = vmatpush2.bf16.msra.mxu0 %v375
    %431 = vmatprep.subr.bf16.mxu0 %v374
    %432 = vmatpush2.bf16.msra.mxu0 %v373
    %433 = vmatprep.subr.bf16.mxu0 %v372
    %434 = vmatpush2.bf16.msra.mxu0 %v371
    %435 = vmatprep.subr.bf16.mxu0 %v370
    %436 = vmatpush2.bf16.msra.mxu0 %v369
    %437 = vmatprep.subr.bf16.mxu0 %v368
    %438 = vmatpush2.bf16.msra.mxu0 %v367
    %439 = vmatprep.subr.bf16.mxu0 %v366
    %440 = vmatpush2.bf16.msra.mxu0 %v365
    %441 = vmatprep.subr.bf16.mxu0 %v364
    %442 = vmatpush2.bf16.msra.mxu0 %v363
    %443 = vmatprep.mubr.bf16.mxu0 %v206
    %444 = vmatmul.mubr.bf16.gmra.mxu0 %v205
    %v445 = vpop.f32.mrf.mxu0
    %v446 = vadd.f32 %v244, %v445
    %v447 = vpop.f32.mrf.mxu0
    %v448 = vadd.f32 %v248, %v447
    %v449 = vpop.f32.mrf.mxu0
    %v450 = vadd.f32 %v244, %v449
    %v451 = vpop.f32.mrf.mxu0
    %v452 = vadd.f32 %v248, %v451
    %453 = vdwg.mxu0
    %vm454 = vcmp.gt.f32.partialorder %v446, 0.0
    %vm455 = vcmp.gt.f32.partialorder %v448, 0.0
    %vm456 = vcmp.gt.f32.partialorder %v450, 0.0
    %vm457 = vcmp.gt.f32.partialorder %v452, 0.0
    %v458 = vmul.f32 %v446, 0.5
    %v459 = vmul.f32 %v448, 0.5
    %v460 = vmul.f32 %v450, 0.5
    %v461 = vmul.f32 %v452, 0.5
    %v462 = vtanh.pop %v458
    %v463 = vtanh.pop %v459
    %v464 = vtanh.pop %v460
    %v465 = vtanh.pop %v461
    %v466 = vmul.f32 %v446, 1.442695
    %v467 = vpow.pop %v466
    %v468 = vmul.f32 %v448, 1.442695
    %v469 = vpow.pop %v468
    %v470 = vmul.f32 %v450, 1.442695
    %v471 = vpow.pop %v470
    %v472 = vmul.f32 %v452, 1.442695
    %v473 = vpow.pop %v472
    %v474 = vadd.f32 %v467, 1.0
    %v475 = vadd.f32 %v469, 1.0
    %v476 = vadd.f32 %v471, 1.0
    %v477 = vadd.f32 %v473, 1.0
    %v478 = vmul.f32 %v462, %v474
    %v479 = vmul.f32 %v463, %v475
    %v480 = vmul.f32 %v464, %v476
    %v481 = vmul.f32 %v465, %v477
    %v482 = vsel %vm454, %v446, %v478
    %v483 = vsel %vm455, %v448, %v479
    %v484 = vsel %vm456, %v450, %v480
    %v485 = vsel %vm457, %v452, %v481
    %v486 = vpack.c.bf16 %v484, %v482
    %v487 = vpack.c.bf16 %v485, %v483
    %v488 = vld [vmem:[#allocation8] sm:$0xf]
    %v489 = vld [vmem:[#allocation8 + $0x4] sm:$0xf]
    %v490 = vld [vmem:[#allocation8 + $0x8] sm:$0xf]
    %v491 = vld [vmem:[#allocation8 + $0xc] sm:$0xf]
    %v492 = vld [vmem:[#allocation8 + $0x10] sm:$0xf]
    %v493 = vld [vmem:[#allocation8 + $0x14] sm:$0xf]
    %v494 = vld [vmem:[#allocation8 + $0x18] sm:$0xf]
    %v495 = vld [vmem:[#allocation8 + $0x1c] sm:$0xf]
    %v496 = vld [vmem:[#allocation8 + $0x20] sm:$0xf]
    %v497 = vld [vmem:[#allocation8 + $0x24] sm:$0xf]
    %v498 = vld [vmem:[#allocation8 + $0x28] sm:$0xf]
    %v499 = vld [vmem:[#allocation8 + $0x2c] sm:$0xf]
    %v500 = vld [vmem:[#allocation8 + $0x30] sm:$0xf]
    %v501 = vld [vmem:[#allocation8 + $0x34] sm:$0xf]
    %v502 = vld [vmem:[#allocation8 + $0x38] sm:$0xf]
    %v503 = vld [vmem:[#allocation8 + $0x3c] sm:$0xf]
    %v504 = vld [vmem:[#allocation8 + $0x40] sm:$0xf]
    %v505 = vld [vmem:[#allocation8 + $0x44] sm:$0xf]
    %v506 = vld [vmem:[#allocation8 + $0x48] sm:$0xf]
    %v507 = vld [vmem:[#allocation8 + $0x4c] sm:$0xf]
    %v508 = vld [vmem:[#allocation8 + $0x50] sm:$0xf]
    %v509 = vld [vmem:[#allocation8 + $0x54] sm:$0xf]
    %v510 = vld [vmem:[#allocation8 + $0x58] sm:$0xf]
    %v511 = vld [vmem:[#allocation8 + $0x5c] sm:$0xf]
    %v512 = vld [vmem:[#allocation8 + $0x60] sm:$0xf]
    %v513 = vld [vmem:[#allocation8 + $0x64] sm:$0xf]
    %v514 = vld [vmem:[#allocation8 + $0x68] sm:$0xf]
    %v515 = vld [vmem:[#allocation8 + $0x6c] sm:$0xf]
    %v516 = vld [vmem:[#allocation8 + $0x70] sm:$0xf]
    %v517 = vld [vmem:[#allocation8 + $0x74] sm:$0xf]
    %v518 = vld [vmem:[#allocation8 + $0x78] sm:$0xf]
    %v519 = vld [vmem:[#allocation8 + $0x7c] sm:$0xf]
    %v520 = vld [vmem:[%s6] sm:$0x1]
    %v522 = vlaneseq
    %v523 = vshrl.u32 %v522, 7
    %v524 = vsub.s32 0, %v523
    %v525 = vrot.slane %v520, %v524
    %v559 = vunpack.c.l.b16 %v488
    %v560 = vunpack.c.l.b16 %v489
    %v561 = vunpack.c.l.b16 %v490
    %v562 = vunpack.c.l.b16 %v491
    %v563 = vunpack.c.l.b16 %v492
    %v564 = vunpack.c.l.b16 %v493
    %v565 = vunpack.c.l.b16 %v494
    %v566 = vunpack.c.l.b16 %v495
    %v567 = vunpack.c.l.b16 %v496
    %v568 = vunpack.c.l.b16 %v497
    %v569 = vunpack.c.l.b16 %v498
    %v570 = vunpack.c.l.b16 %v499
    %v571 = vunpack.c.l.b16 %v500
    %v572 = vunpack.c.l.b16 %v501
    %v573 = vunpack.c.l.b16 %v502
    %v574 = vunpack.c.l.b16 %v503
    %v575 = vunpack.c.l.b16 %v504
    %v576 = vunpack.c.l.b16 %v505
    %v577 = vunpack.c.l.b16 %v506
    %v578 = vunpack.c.l.b16 %v507
    %v579 = vunpack.c.l.b16 %v508
    %v580 = vunpack.c.l.b16 %v509
    %v581 = vunpack.c.l.b16 %v510
    %v582 = vunpack.c.l.b16 %v511
    %v583 = vunpack.c.l.b16 %v512
    %v584 = vunpack.c.l.b16 %v513
    %v585 = vunpack.c.l.b16 %v514
    %v586 = vunpack.c.l.b16 %v515
    %v587 = vunpack.c.l.b16 %v516
    %v588 = vunpack.c.l.b16 %v517
    %v589 = vunpack.c.l.b16 %v518
    %v590 = vunpack.c.l.b16 %v519
    %v591 = vpack.c.b16 %v560, %v559
    %v592 = vpack.c.b16 %v562, %v561
    %v593 = vpack.c.b16 %v564, %v563
    %v594 = vpack.c.b16 %v566, %v565
    %v595 = vpack.c.b16 %v568, %v567
    %v596 = vpack.c.b16 %v570, %v569
    %v597 = vpack.c.b16 %v572, %v571
    %v598 = vpack.c.b16 %v574, %v573
    %v599 = vpack.c.b16 %v576, %v575
    %v600 = vpack.c.b16 %v578, %v577
    %v601 = vpack.c.b16 %v580, %v579
    %v602 = vpack.c.b16 %v582, %v581
    %v603 = vpack.c.b16 %v584, %v583
    %v604 = vpack.c.b16 %v586, %v585
    %v605 = vpack.c.b16 %v588, %v587
    %v606 = vpack.c.b16 %v590, %v589
    %623 = vmatprep.subr.bf16.mxu0 0
    %624 = vmatpush1.bf16.msra.mxu0 %v598
    %625 = vmatprep.subr.bf16.mxu0 0
    %626 = vmatpush1.bf16.msra.mxu0 %v597
    %627 = vmatprep.subr.bf16.mxu0 0
    %628 = vmatpush1.bf16.msra.mxu0 %v596
    %629 = vmatprep.subr.bf16.mxu0 0
    %630 = vmatpush1.bf16.msra.mxu0 %v595
    %631 = vmatprep.subr.bf16.mxu0 0
    %632 = vmatpush1.bf16.msra.mxu0 %v594
    %633 = vmatprep.subr.bf16.mxu0 0
    %634 = vmatpush1.bf16.msra.mxu0 %v593
    %635 = vmatprep.subr.bf16.mxu0 0
    %636 = vmatpush1.bf16.msra.mxu0 %v592
    %637 = vmatprep.subr.bf16.mxu0 0
    %638 = vmatpush1.bf16.msra.mxu0 %v591
    %639 = vmatprep.subr.bf16.mxu0 0
    %640 = vmatpush2.bf16.msra.mxu0 %v606
    %641 = vmatprep.subr.bf16.mxu0 0
    %642 = vmatpush2.bf16.msra.mxu0 %v605
    %643 = vmatprep.subr.bf16.mxu0 0
    %644 = vmatpush2.bf16.msra.mxu0 %v604
    %645 = vmatprep.subr.bf16.mxu0 0
    %646 = vmatpush2.bf16.msra.mxu0 %v603
    %647 = vmatprep.subr.bf16.mxu0 0
    %648 = vmatpush2.bf16.msra.mxu0 %v602
    %649 = vmatprep.subr.bf16.mxu0 0
    %650 = vmatpush2.bf16.msra.mxu0 %v601
    %651 = vmatprep.subr.bf16.mxu0 0
    %652 = vmatpush2.bf16.msra.mxu0 %v600
    %653 = vmatprep.subr.bf16.mxu0 0
    %654 = vmatpush2.bf16.msra.mxu0 %v599
    %655 = vmatprep.mubr.bf16.mxu0 %v487
    %656 = vmatmul.mubr.bf16.gmra.mxu0 %v486
    %v657 = vpop.f32.mrf.mxu0
    %v658 = vadd.f32 %v525, %v657
    %v659 = vpop.f32.mrf.mxu0
    %v660 = vpop.f32.mrf.mxu0
    %v661 = vadd.f32 %v525, %v660
    %v662 = vpop.f32.mrf.mxu0
    %663 = vdwg.mxu0
    %v664 = vsub.f32 0.0, %v658
    %v665 = vsub.f32 0.0, %v661
    %v666 = vmul.f32 %v664, 1.442695
    %v667 = vpow.pop %v666
    %v668 = vmul.f32 %v665, 1.442695
    %v669 = vpow.pop %v668
    %v670 = vadd.f32 %v667, 1.0
    %v671 = vadd.f32 %v669, 1.0
    %v672 = vrcp.pop %v670
    %v673 = vrcp.pop %v671
    %674 = vst [vmem:[#allocation10] sm:$0xff] %v672
    %675 = vst [vmem:[#allocation10 + $0x8] sm:$0xff] %v673
    // Predicated region
    $region46: #{tpu_custom_call.1} parent=1 // pred_check
      _
    $region47: #{tpu_custom_call.1} parent=1 // pred_check_branch
      %677 = sbr.rel (0) target = $region49
    $region48: #{tpu_custom_call.1} parent=1 // pred_region
      %s679 = ssub.s32 256, 256
      %680 = vsyncadd [#allocation4], %s679
      %s681 = sshll.u32 [#allocation10], 4
      %s682 = int_to_ptr.vmem [resolvable:$true] %s681
      %687 = dma.vmem_to_hbm [thread:$0]  %s682, 256, %s7, [#allocation4], 128, 128, 8
    $region49: #{tpu_custom_call.1} parent=1 // pred_fallthru
      _
    // Predicated region
    $region50: #{tpu_custom_call.1} parent=1 // pred_check
      _
    $region51: #{tpu_custom_call.1} parent=1 // pred_check_branch
      %689 = sbr.rel (0) target = $region53
    $region52: #{tpu_custom_call.1} parent=1 // pred_region
      %690 = dma.done [#allocation4], 256
    $region53: #{tpu_custom_call.1} parent=1 // pred_fallthru
      _
    %691 = vsyncpa [#allocation3], 1
    %692 = vsyncpa [#allocation6], 1
    %693 = vsyncpa [#allocation9], 1
    %694 = vsyncpa [#allocation4], 1

</llo_original>
